<compile_context>
chip_gen: v7x
topology: tpu7x:2x2x1
jax: 0.10.0
libtpu: 0.0.40
codegen_flags: <defaults>
</compile_context>

<pallas_src>
import math
import jax
import jax.numpy as jnp
from jax.experimental import pallas as pl
from jax.experimental.pallas import tpu as pltpu


def _round_up(x, m):
    return ((x + m - 1) // m) * m


def _device_config():
    """Per-generation tiling / VMEM budgets (conservative fallback if unknown)."""
    kind = ""
    try:
        kind = jax.devices()[0].device_kind.lower()
    except Exception:
        pass
    if "v7" in kind:
        # 64 MiB VMEM / TC, 2 TCs per chip: keep >=2 row tiles for megacore,
        # leave headroom under the physical 64 MiB.
        return {"vmem_limit": 40 << 20, "resident_budget": 16 << 20,
                "two_row_tiles": True, "row_tiles": (512, 256, 128)}
    if "v6" in kind or "v5" in kind or "v4" in kind:
        # 128 MiB physical VMEM; v5e/v6e are single-TensorCore, so do not
        # shrink tm just to get two row tiles (v4/v5p do have 2 TCs).
        two = ("v4" in kind) or ("v5p" in kind)
        return {"vmem_limit": 96 << 20, "resident_budget": 40 << 20,
                "two_row_tiles": two, "row_tiles": (1024, 512, 256, 128)}
    return {"vmem_limit": 32 << 20, "resident_budget": 12 << 20,
            "two_row_tiles": True, "row_tiles": (512, 256, 128)}


def _pick_tile(n, candidates, want_two_tiles):
    """Largest tile (multiple of 128) with at most half a tile of waste."""
    tile = candidates[-1]
    for t in candidates:
        if _round_up(n, t) - n <= t // 2:
            tile = t
            break
    if want_two_tiles:
        while tile > 128 and _round_up(n, tile) // tile < 2:
            tile //= 2
    return tile


def _invariant_block_spec(block_shape, index_map):
    """Grid-invariant (resident) operand: single-buffer it to halve its VMEM."""
    try:
        return pl.BlockSpec(block_shape, index_map, pipeline_mode=pl.Buffered(1))
    except Exception:  # pragma: no cover - older jax without pipeline_mode
        return pl.BlockSpec(block_shape, index_map)


# ---------------------------------------------------------------------------
# Kernel 1 (prologue): support = x @ W, computed exactly once, bf16 output.
# The padded row tail of `support` is forced to exact zeros so the main
# kernel's reduction over the ragged k tail stays clean.
# ---------------------------------------------------------------------------
def _make_support_kernel(tile_rows, n_valid, needs_row_mask):
    def kernel(x_ref, w_ref, s_ref):
        sup = jnp.dot(x_ref[...], w_ref[...], preferred_element_type=jnp.float32)
        if needs_row_mask:
            r0 = pl.program_id(0) * tile_rows
            rows = r0 + jax.lax.broadcasted_iota(jnp.int32, sup.shape, 0)
            sup = jnp.where(rows < n_valid, sup, 0.0)
        s_ref[...] = sup.astype(s_ref.dtype)
    return kernel


# ---------------------------------------------------------------------------
# Kernel 2 (main): out[i,:] = sum_k adj[i, k-block] @ support[k-block, :] (+bias)
# adj streamed once in its native dtype; support resident (or k-streamed).
# ---------------------------------------------------------------------------
def _make_main_kernel(tk, n_valid, needs_k_mask, support_resident, has_bias):
    def kernel(adj_ref, s_ref, *rest):
        if has_bias:
            b_ref, o_ref = rest
        else:
            (o_ref,) = rest

        k = pl.program_id(1)

        @pl.when(k == 0)
        def _zero():
            o_ref[...] = jnp.zeros_like(o_ref)

        adj_blk = adj_ref[...]
        if needs_k_mask:
            # Zero the ragged reduction tail (garbage columns in the partial
            # edge block of the un-padded adjacency).
            cols = k * tk + jax.lax.broadcasted_iota(jnp.int32, adj_blk.shape, 1)
            adj_blk = jnp.where(cols < n_valid, adj_blk, jnp.zeros_like(adj_blk))

        if support_resident:
            row0 = pl.multiple_of(k * tk, tk)
            s_blk = s_ref[pl.ds(row0, tk), :]
        else:
            s_blk = s_ref[...]

        if adj_blk.dtype != s_blk.dtype:
            common = jnp.promote_types(adj_blk.dtype, s_blk.dtype)
            adj_blk = adj_blk.astype(common)
            s_blk = s_blk.astype(common)

        # accumulate directly into the resident f32 output block
        o_ref[...] += jnp.dot(adj_blk, s_blk, preferred_element_type=jnp.float32)

        if has_bias:
            @pl.when(k == pl.num_programs(1) - 1)
            def _bias():
                o_ref[...] += b_ref[...]

    return kernel


# ---------------------------------------------------------------------------
# Wrapper
# ---------------------------------------------------------------------------
def graph_convolution(x, adj, weight, bias=None, *, tm=None, tk=None):
    """Pallas implementation of GraphConvolution.forward(input, adj)."""
    n, f_in = x.shape
    assert adj.shape == (n, n)
    f_in_w, f_out = weight.shape
    assert f_in_w == f_in

    cfg = _device_config()
    f_out_p = _round_up(f_out, 128)

    if tk is None:
        tk = _pick_tile(n, (512, 256, 128), want_two_tiles=False)
    if tm is None:
        tm = _pick_tile(n, cfg["row_tiles"], want_two_tiles=cfg["two_row_tiles"])

    k_p = _round_up(n, tk)          # padded reduction extent (= support rows)
    needs_k_mask = (k_p != n)

    # Tiny parameter copies only (W, bias). adj itself is never copied/padded.
    w_p = jnp.pad(weight.astype(jnp.float32), ((0, 0), (0, f_out_p - f_out)))

    # ---- prologue: support = x @ W (read x and W from HBM exactly once) ----
    # TODO(synk): the prologue keeps the full f_in dimension in one block;
    # for very large feature dims (>~8k f32) it should also tile/reduce f_in.
    support = pl.pallas_call(
        _make_support_kernel(tk, n, needs_k_mask),
        out_shape=jax.ShapeDtypeStruct((k_p, f_out_p), jnp.bfloat16),
        grid_spec=pltpu.PrefetchScalarGridSpec(
            num_scalar_prefetch=0,
            grid=(k_p // tk,),
            in_specs=[
                pl.BlockSpec((tk, f_in), lambda r: (r, 0)),                 # x: one pass
                _invariant_block_spec((f_in, f_out_p), lambda r: (0, 0)),   # W: resident
            ],
            out_specs=pl.BlockSpec((tk, f_out_p), lambda r: (r, 0)),
        ),
        compiler_params=pltpu.CompilerParams(
            dimension_semantics=("parallel",),
            vmem_limit_bytes=cfg["vmem_limit"]),
    )(x.astype(jnp.float32), w_p)

    # ---- main: out = adj @ support (+ bias); adj is the only HBM stream ----
    support_resident = (k_p * f_out_p * 2) <= cfg["resident_budget"]
    if support_resident:
        s_spec = _invariant_block_spec((k_p, f_out_p), lambda i, k: (0, 0))
    else:
        # Fallback for very large graphs: stream the k-block of support
        # (f_out_p/tm extra HBM traffic relative to adj - still adj-dominated).
        s_spec = pl.BlockSpec((tk, f_out_p), lambda i, k: (k, 0))

    in_specs = [
        pl.BlockSpec((tm, tk), lambda i, k: (i, k)),   # adj: single pass, native dtype
        s_spec,
    ]
    operands = [adj, support]

    has_bias = bias is not None
    if has_bias:
        b_p = jnp.pad(bias.astype(jnp.float32),
                      (0, f_out_p - f_out)).reshape(1, f_out_p)
        in_specs.append(_invariant_block_spec((1, f_out_p), lambda i, k: (0, 0)))
        operands.append(b_p)

    out_p = pl.pallas_call(
        _make_main_kernel(tk, n, needs_k_mask, support_resident, has_bias),
        out_shape=jax.ShapeDtypeStruct((n, f_out_p), jnp.float32),
        grid_spec=pltpu.PrefetchScalarGridSpec(
            num_scalar_prefetch=0,
            grid=(pl.cdiv(n, tm), k_p // tk),
            in_specs=in_specs,
            out_specs=pl.BlockSpec((tm, f_out_p), lambda i, k: (i, 0)),
        ),
        compiler_params=pltpu.CompilerParams(
            dimension_semantics=("parallel", "arbitrary"),
            vmem_limit_bytes=cfg["vmem_limit"]),
    )(*operands)

    return out_p[:, :f_out]


# ---------------------------------------------------------------------------
# Deterministic parameter init (mirrors reset_parameters: U(-stdv, stdv))
# ---------------------------------------------------------------------------
def init_params(key, in_features, out_features, use_bias=True):
    stdv = 1.0 / math.sqrt(out_features)
    kw, kb = jax.random.split(key)
    weight = jax.random.uniform(kw, (in_features, out_features),
                                dtype=jnp.float32, minval=-stdv, maxval=stdv)
    bias = None
    if use_bias:
        bias = jax.random.uniform(kb, (out_features,),
                                  dtype=jnp.float32, minval=-stdv, maxval=stdv)
    return weight, bias


if __name__ == "__main__":
    key = jax.random.PRNGKey(0)
    k_x, k_adj, k_p, k_x2, k_adj2, k_p2 = jax.random.split(key, 6)

    # deliberately non-multiples of 128 to exercise the ragged-edge masking
    num_nodes = 200
    in_features = 96
    out_features = 72

    x = jax.random.normal(k_x, (num_nodes, in_features), dtype=jnp.float32)

    # simple symmetric row-normalized adjacency (dense stand-in for spmm)
    a_raw = (jax.random.uniform(k_adj, (num_nodes, num_nodes)) > 0.9).astype(jnp.float32)
    a_sym = jnp.maximum(a_raw, a_raw.T) + jnp.eye(num_nodes, dtype=jnp.float32)
    adj = a_sym / jnp.sum(a_sym, axis=1, keepdims=True)

    weight, bias = init_params(k_p, in_features, out_features, use_bias=True)

    # Keep adj in bf16 "upstream" (producer-side): the wrapper streams it
    # directly, with no padded copy materialised before the kernel.
    adj_bf16 = adj.astype(jnp.bfloat16)

    out = graph_convolution(x, adj_bf16, weight, bias)
    out = jax.block_until_ready(out)

    ref = adj @ (x @ weight) + bias
    assert out.shape == (num_nodes, out_features)
    err = float(jnp.max(jnp.abs(out - ref)))
    assert jnp.allclose(out, ref, atol=3e-2, rtol=3e-2), err

    # second config: no bias, f32 adjacency (higher-precision path)
    n2, fi2, fo2 = 300, 64, 40
    x2 = jax.random.normal(k_x2, (n2, fi2), dtype=jnp.float32)
    a2 = jax.random.uniform(k_adj2, (n2, n2), dtype=jnp.float32)
    a2 = a2 / jnp.sum(a2, axis=1, keepdims=True)
    w2, _ = init_params(k_p2, fi2, fo2, use_bias=False)
    out2 = jax.block_until_ready(graph_convolution(x2, a2, w2, None))
    ref2 = a2 @ (x2 @ w2)
    assert out2.shape == (n2, fo2)
    err2 = float(jnp.max(jnp.abs(out2 - ref2)))
    assert jnp.allclose(out2, ref2, atol=3e-2, rtol=3e-2), err2

    print("KERNEL_OK")
</pallas_src>

<mosaic_0001>
module attributes {stable_mosaic.version = 11 : i64} {
  func.func @kernel(%arg0: i32, %arg1: memref<256x96xf32, #tpu.memory_space<vmem>>, %arg2: memref<96x128xf32, #tpu.memory_space<vmem>>, %arg3: memref<256x128xbf16, #tpu.memory_space<vmem>>) attributes {dimension_semantics = [#tpu.dimension_semantics<parallel>], iteration_bounds = array<i64: 1>, scalar_prefetch = 0 : i64, scratch_operands = 0 : i64, tpu.core_type = #tpu.core_type<tc>, window_params = [{transform_indices = @transform_0, window_bounds = array<i64: 256, 96>}, {pipeline_mode = #tpu.pipeline_mode<synchronous>, transform_indices = @transform_1, window_bounds = array<i64: 96, 128>}, {transform_indices = @transform_2, window_bounds = array<i64: 256, 128>}]} {
    %c0 = arith.constant 0 : index
    %c0_0 = arith.constant 0 : index
    %0 = vector.load %arg1[%c0, %c0_0] : memref<256x96xf32, #tpu.memory_space<vmem>>, vector<256x96xf32>
    %c0_1 = arith.constant 0 : index
    %c0_2 = arith.constant 0 : index
    %1 = vector.load %arg2[%c0_1, %c0_2] : memref<96x128xf32, #tpu.memory_space<vmem>>, vector<96x128xf32>
    %cst = arith.constant dense<0.000000e+00> : vector<256x128xf32>
    %2 = tpu.matmul %0, %1, %cst {dimension_numbers = #tpu.dot_dimension_numbers<[1], [0], [0], [1], [0, 0, 1, 1], [], []>} : vector<256x96xf32>, vector<96x128xf32>, vector<256x128xf32> -> vector<256x128xf32>
    %c256_i32 = arith.constant 256 : i32
    %3 = arith.muli %arg0, %c256_i32 : i32
    %4 = tpu.iota {dimensions = array<i32: 0>} : vector<256x128xi32>
    %5 = vector.broadcast %3 : i32 to vector<256x128xi32>
    %6 = arith.addi %5, %4 : vector<256x128xi32>
    %c200_i32 = arith.constant 200 : i32
    %7 = vector.broadcast %c200_i32 : i32 to vector<256x128xi32>
    %8 = arith.cmpi slt, %6, %7 : vector<256x128xi32>
    %cst_3 = arith.constant 0.000000e+00 : f32
    %9 = vector.broadcast %cst_3 : f32 to vector<256x128xf32>
    %10 = arith.select %8, %2, %9 : vector<256x128xi1>, vector<256x128xf32>
    %11 = arith.truncf %10 : vector<256x128xf32> to vector<256x128xbf16>
    %c0_4 = arith.constant 0 : index
    %c0_5 = arith.constant 0 : index
    %12 = vector.load %arg3[%c0_4, %c0_5] : memref<256x128xbf16, #tpu.memory_space<vmem>>, vector<256x128xbf16>
    tpu.vector_store %arg3[%c0_4, %c0_5], %11 {strides = array<i32>} : memref<256x128xbf16, #tpu.memory_space<vmem>>, vector<256x128xbf16>,
    return
  }
  func.func @transform_0(%arg0: i32) -> (i32, i32) {
    %c0_i32 = arith.constant 0 : i32
    %c0_i32_0 = arith.constant 0 : i32
    return %arg0, %c0_i32 : i32, i32
  }
  func.func @transform_1(%arg0: i32) -> (i32, i32) {
    %c0_i32 = arith.constant 0 : i32
    %c0_i32_0 = arith.constant 0 : i32
    %c0_i32_1 = arith.constant 0 : i32
    return %c0_i32, %c0_i32_0 : i32, i32
  }
  func.func @transform_2(%arg0: i32) -> (i32, i32) {
    %c0_i32 = arith.constant 0 : i32
    %c0_i32_0 = arith.constant 0 : i32
    return %arg0, %c0_i32 : i32, i32
  }
}

</mosaic_0001>

<llo_original>
// kernel: tpu_custom_call.1
$region0: #{tpu_custom_call.1}
  #allocation0 [shape = 'u32[]', space=smem, size = 0x4, offset = 0x4, fixed_abs, tag = 'smem constant byte address 0x4 - core index']
  #allocation1 [shape = 'u32[144,128]{1,0:T(1,128)}', space=vmem, size = 0x12000, scoped, tag = 'internal scratch']
  %s0 = inlined_call_operand.vmem [shape: f32[200,96], index: 0, kind: input, shape index: {}]
  %s1 = inlined_call_operand.vmem [shape: f32[96,128], index: 1, kind: input, shape index: {}]
  %s2 = inlined_call_operand.hbm [shape: bf16[256,128], index: 2, kind: output, shape index: {}]
  %s3 = sld [smem:[#allocation0]]
  $region18: #{tpu_custom_call.1} parent=0
    _
  %s5 = ssub.s32 1, %s3
  %s6 = scalar_select 0, %s5, %s3
  $region1: #{tpu_custom_call.1} parent=0
    #allocation2 [shape = 'u8[65536]{0}', space=vmem, size = 0x10000, scoped, tag = 'output window, operand 0, single buffered']
    #allocation3 [shape = 's32[1]{0}', space=sflag, size = 0x4, scoped, tag = 'scoped memory for tpu_custom_call.1']
    %7 = vsyncpa [#allocation3], 0
    // Predicated region
    $region2: #{tpu_custom_call.1} parent=1 // pred_check
      _
    $region3: #{tpu_custom_call.1} parent=1 // pred_check_branch
      %9 = sbr.rel (0) target = $region5
    $region4: #{tpu_custom_call.1} parent=1 // pred_region
      _
    $region5: #{tpu_custom_call.1} parent=1 // pred_fallthru
      _
    // Predicated region
    $region6: #{tpu_custom_call.1} parent=1 // pred_check
      _
    $region7: #{tpu_custom_call.1} parent=1 // pred_check_branch
      %11 = sbr.rel (0) target = $region9
    $region8: #{tpu_custom_call.1} parent=1 // pred_region
      _
    $region9: #{tpu_custom_call.1} parent=1 // pred_fallthru
      _
    %v12 = vld [vmem:[%s0] sm:$0xff]
    %v13 = vld [vmem:[%s0 + $0x8] sm:$0xff]
    %v14 = vld [vmem:[%s0 + $0x10] sm:$0xff]
    %v15 = vld [vmem:[%s0 + $0x18] sm:$0xff]
    %v16 = vld [vmem:[%s0 + $0x20] sm:$0xff]
    %v17 = vld [vmem:[%s0 + $0x28] sm:$0xff]
    %v18 = vld [vmem:[%s0 + $0x30] sm:$0xff]
    %v19 = vld [vmem:[%s0 + $0x38] sm:$0xff]
    %v20 = vld [vmem:[%s0 + $0x40] sm:$0xff]
    %v21 = vld [vmem:[%s0 + $0x48] sm:$0xff]
    %v22 = vld [vmem:[%s0 + $0x50] sm:$0xff]
    %v23 = vld [vmem:[%s0 + $0x58] sm:$0xff]
    %v24 = vld [vmem:[%s0 + $0x60] sm:$0xff]
    %v25 = vld [vmem:[%s0 + $0x68] sm:$0xff]
    %v26 = vld [vmem:[%s0 + $0x70] sm:$0xff]
    %v27 = vld [vmem:[%s0 + $0x78] sm:$0xff]
    %v28 = vld [vmem:[%s0 + $0x80] sm:$0xff]
    %v29 = vld [vmem:[%s0 + $0x88] sm:$0xff]
    %v30 = vld [vmem:[%s0 + $0x90] sm:$0xff]
    %v31 = vld [vmem:[%s0 + $0x98] sm:$0xff]
    %v32 = vld [vmem:[%s0 + $0xa0] sm:$0xff]
    %v33 = vld [vmem:[%s0 + $0xa8] sm:$0xff]
    %v34 = vld [vmem:[%s0 + $0xb0] sm:$0xff]
    %v35 = vld [vmem:[%s0 + $0xb8] sm:$0xff]
    %v36 = vld [vmem:[%s0 + $0xc0] sm:$0xff]
    %v37 = vld [vmem:[%s0 + $0xc8] sm:$0xff]
    %v38 = vld [vmem:[%s0 + $0xd0] sm:$0xff]
    %v39 = vld [vmem:[%s0 + $0xd8] sm:$0xff]
    %v40 = vld [vmem:[%s0 + $0xe0] sm:$0xff]
    %v41 = vld [vmem:[%s0 + $0xe8] sm:$0xff]
    %v42 = vld [vmem:[%s0 + $0xf0] sm:$0xff]
    %v43 = vld [vmem:[%s0 + $0xf8] sm:$0xff]
    %v44 = vld [vmem:[%s1] sm:$0xff]
    %v45 = vld [vmem:[%s1 + $0x8] sm:$0xff]
    %v46 = vld [vmem:[%s1 + $0x10] sm:$0xff]
    %v47 = vld [vmem:[%s1 + $0x18] sm:$0xff]
    %v48 = vld [vmem:[%s1 + $0x20] sm:$0xff]
    %v49 = vld [vmem:[%s1 + $0x28] sm:$0xff]
    %v50 = vld [vmem:[%s1 + $0x30] sm:$0xff]
    %v51 = vld [vmem:[%s1 + $0x38] sm:$0xff]
    %v52 = vld [vmem:[%s1 + $0x40] sm:$0xff]
    %v53 = vld [vmem:[%s1 + $0x48] sm:$0xff]
    %v54 = vld [vmem:[%s1 + $0x50] sm:$0xff]
    %v55 = vld [vmem:[%s1 + $0x58] sm:$0xff]
    %vm56 = vcmask 785408
    %v58 = vsel %vm56, %v12, 0
    %v61 = vsel %vm56, %v13, 0
    %v64 = vsel %vm56, %v14, 0
    %v67 = vsel %vm56, %v15, 0
    %v70 = vsel %vm56, %v16, 0
    %v73 = vsel %vm56, %v17, 0
    %v76 = vsel %vm56, %v18, 0
    %v79 = vsel %vm56, %v19, 0
    %v82 = vsel %vm56, %v20, 0
    %v85 = vsel %vm56, %v21, 0
    %v88 = vsel %vm56, %v22, 0
    %v91 = vsel %vm56, %v23, 0
    %v94 = vsel %vm56, %v24, 0
    %v97 = vsel %vm56, %v25, 0
    %v100 = vsel %vm56, %v26, 0
    %v103 = vsel %vm56, %v27, 0
    %v106 = vsel %vm56, %v28, 0
    %v109 = vsel %vm56, %v29, 0
    %v112 = vsel %vm56, %v30, 0
    %v115 = vsel %vm56, %v31, 0
    %v118 = vsel %vm56, %v32, 0
    %v121 = vsel %vm56, %v33, 0
    %v124 = vsel %vm56, %v34, 0
    %v127 = vsel %vm56, %v35, 0
    %v130 = vsel %vm56, %v36, 0
    %v133 = vsel %vm56, %v37, 0
    %v136 = vsel %vm56, %v38, 0
    %v139 = vsel %vm56, %v39, 0
    %v142 = vsel %vm56, %v40, 0
    %v145 = vsel %vm56, %v41, 0
    %v148 = vsel %vm56, %v42, 0
    %v151 = vsel %vm56, %v43, 0
    %153 = vmatprep.subr.mxu0 0.0
    %154 = vmatpush1.msra.mxu0 %v44
    %155 = vmatprep.subr.mxu0 0.0
    %156 = vmatpush1.msra.mxu0 %v45
    %157 = vmatprep.subr.mxu0 0.0
    %158 = vmatpush1.msra.mxu0 %v46
    %159 = vmatprep.subr.mxu0 0.0
    %160 = vmatpush1.msra.mxu0 %v47
    %161 = vmatprep.subr.mxu0 0.0
    %162 = vmatpush1.msra.mxu0 %v48
    %163 = vmatprep.subr.mxu0 0.0
    %164 = vmatpush1.msra.mxu0 %v49
    %165 = vmatprep.subr.mxu0 0.0
    %166 = vmatpush1.msra.mxu0 %v50
    %167 = vmatprep.subr.mxu0 0.0
    %168 = vmatpush1.msra.mxu0 %v51
    %169 = vmatprep.subr.mxu0 0.0
    %170 = vmatpush1.msra.mxu0 %v52
    %171 = vmatprep.subr.mxu0 0.0
    %172 = vmatpush1.msra.mxu0 %v53
    %173 = vmatprep.subr.mxu0 0.0
    %174 = vmatpush1.msra.mxu0 %v54
    %175 = vmatprep.subr.mxu0 0.0
    %176 = vmatpush1.msra.mxu0 %v55
    %177 = vmatprep.subr.mxu0 0.0
    %178 = vmatpush1.msra.mxu0 0.0
    %179 = vmatprep.subr.mxu0 0.0
    %180 = vmatpush1.msra.mxu0 0.0
    %181 = vmatprep.subr.mxu0 0.0
    %182 = vmatpush1.msra.mxu0 0.0
    %183 = vmatprep.subr.mxu0 0.0
    %184 = vmatpush1.msra.mxu0 0.0
    %185 = vmatprep.subr.mxu0 0.0
    %186 = vmatpush1.msra.mxu0 0.0
    %187 = vmatprep.subr.mxu0 0.0
    %188 = vmatpush1.msra.mxu0 0.0
    %189 = vmatprep.subr.mxu0 0.0
    %190 = vmatpush1.msra.mxu0 0.0
    %191 = vmatprep.subr.mxu0 0.0
    %192 = vmatpush1.msra.mxu0 0.0
    %193 = vmatprep.subr.mxu0 0.0
    %194 = vmatpush1.msra.mxu0 0.0
    %195 = vmatprep.subr.mxu0 0.0
    %196 = vmatpush1.msra.mxu0 0.0
    %197 = vmatprep.subr.mxu0 0.0
    %198 = vmatpush1.msra.mxu0 0.0
    %199 = vmatprep.subr.mxu0 0.0
    %200 = vmatpush1.msra.mxu0 0.0
    %201 = vmatprep.subr.mxu0 0.0
    %202 = vmatpush1.msra.mxu0 0.0
    %203 = vmatprep.subr.mxu0 0.0
    %204 = vmatpush1.msra.mxu0 0.0
    %205 = vmatprep.subr.mxu0 0.0
    %206 = vmatpush1.msra.mxu0 0.0
    %207 = vmatprep.subr.mxu0 0.0
    %208 = vmatpush1.msra.mxu0 0.0
    %209 = vmatprep.subr.mxu0 0.0
    %210 = vmatpush1.msra.mxu0 0.0
    %211 = vmatprep.subr.mxu0 0.0
    %212 = vmatpush1.msra.mxu0 0.0
    %213 = vmatprep.subr.mxu0 0.0
    %214 = vmatpush1.msra.mxu0 0.0
    %215 = vmatprep.subr.mxu0 0.0
    %216 = vmatpush1.msra.mxu0 0.0
    %217 = vmatprep.mubr.f32.mxu0 0.0
    %218 = vmatmul.mubr.f32.gmra.mrb[0].mxu0 %v58
    %v219 = vpop.f32.mrb[0].mxu0
    %v220 = vadd.f32 0.0, %v219
    %v221 = vpop.f32.mrb[0].mxu0
    %222 = vmatprep.mubr.f32.mxu0 0.0
    %223 = vmatmul.mubr.f32.gmra.mrb[0].mxu0 %v61
    %v224 = vpop.f32.mrb[0].mxu0
    %v225 = vadd.f32 0.0, %v224
    %v226 = vpop.f32.mrb[0].mxu0
    %227 = vmatprep.mubr.f32.mxu0 0.0
    %228 = vmatmul.mubr.f32.gmra.mrb[0].mxu0 %v64
    %v229 = vpop.f32.mrb[0].mxu0
    %v230 = vadd.f32 0.0, %v229
    %v231 = vpop.f32.mrb[0].mxu0
    %232 = vmatprep.mubr.f32.mxu0 0.0
    %233 = vmatmul.mubr.f32.gmra.mrb[0].mxu0 %v67
    %v234 = vpop.f32.mrb[0].mxu0
    %v235 = vadd.f32 0.0, %v234
    %v236 = vpop.f32.mrb[0].mxu0
    %237 = vmatprep.mubr.f32.mxu0 0.0
    %238 = vmatmul.mubr.f32.gmra.mrb[0].mxu0 %v70
    %v239 = vpop.f32.mrb[0].mxu0
    %v240 = vadd.f32 0.0, %v239
    %v241 = vpop.f32.mrb[0].mxu0
    %242 = vmatprep.mubr.f32.mxu0 0.0
    %243 = vmatmul.mubr.f32.gmra.mrb[0].mxu0 %v73
    %v244 = vpop.f32.mrb[0].mxu0
    %v245 = vadd.f32 0.0, %v244
    %v246 = vpop.f32.mrb[0].mxu0
    %247 = vmatprep.mubr.f32.mxu0 0.0
    %248 = vmatmul.mubr.f32.gmra.mrb[0].mxu0 %v76
    %v249 = vpop.f32.mrb[0].mxu0
    %v250 = vadd.f32 0.0, %v249
    %v251 = vpop.f32.mrb[0].mxu0
    %252 = vmatprep.mubr.f32.mxu0 0.0
    %253 = vmatmul.mubr.f32.gmra.mrb[0].mxu0 %v79
    %v254 = vpop.f32.mrb[0].mxu0
    %v255 = vadd.f32 0.0, %v254
    %v256 = vpop.f32.mrb[0].mxu0
    %257 = vmatprep.mubr.f32.mxu0 0.0
    %258 = vmatmul.mubr.f32.gmra.mrb[0].mxu0 %v82
    %v259 = vpop.f32.mrb[0].mxu0
    %v260 = vadd.f32 0.0, %v259
    %v261 = vpop.f32.mrb[0].mxu0
    %262 = vmatprep.mubr.f32.mxu0 0.0
    %263 = vmatmul.mubr.f32.gmra.mrb[0].mxu0 %v85
    %v264 = vpop.f32.mrb[0].mxu0
    %v265 = vadd.f32 0.0, %v264
    %v266 = vpop.f32.mrb[0].mxu0
    %267 = vmatprep.mubr.f32.mxu0 0.0
    %268 = vmatmul.mubr.f32.gmra.mrb[0].mxu0 %v88
    %v269 = vpop.f32.mrb[0].mxu0
    %v270 = vadd.f32 0.0, %v269
    %v271 = vpop.f32.mrb[0].mxu0
    %272 = vmatprep.mubr.f32.mxu0 0.0
    %273 = vmatmul.mubr.f32.gmra.mrb[0].mxu0 %v91
    %v274 = vpop.f32.mrb[0].mxu0
    %v275 = vadd.f32 0.0, %v274
    %v276 = vpop.f32.mrb[0].mxu0
    %277 = vmatprep.mubr.f32.mxu0 0.0
    %278 = vmatmul.mubr.f32.gmra.mrb[0].mxu0 %v94
    %v279 = vpop.f32.mrb[0].mxu0
    %v280 = vadd.f32 0.0, %v279
    %v281 = vpop.f32.mrb[0].mxu0
    %282 = vmatprep.mubr.f32.mxu0 0.0
    %283 = vmatmul.mubr.f32.gmra.mrb[0].mxu0 %v97
    %v284 = vpop.f32.mrb[0].mxu0
    %v285 = vadd.f32 0.0, %v284
    %v286 = vpop.f32.mrb[0].mxu0
    %287 = vmatprep.mubr.f32.mxu0 0.0
    %288 = vmatmul.mubr.f32.gmra.mrb[0].mxu0 %v100
    %v289 = vpop.f32.mrb[0].mxu0
    %v290 = vadd.f32 0.0, %v289
    %v291 = vpop.f32.mrb[0].mxu0
    %292 = vmatprep.mubr.f32.mxu0 0.0
    %293 = vmatmul.mubr.f32.gmra.mrb[0].mxu0 %v103
    %v294 = vpop.f32.mrb[0].mxu0
    %v295 = vadd.f32 0.0, %v294
    %v296 = vpop.f32.mrb[0].mxu0
    %297 = vmatprep.mubr.f32.mxu0 0.0
    %298 = vmatmul.mubr.f32.gmra.mrb[0].mxu0 %v106
    %v299 = vpop.f32.mrb[0].mxu0
    %v300 = vadd.f32 0.0, %v299
    %v301 = vpop.f32.mrb[0].mxu0
    %302 = vmatprep.mubr.f32.mxu0 0.0
    %303 = vmatmul.mubr.f32.gmra.mrb[0].mxu0 %v109
    %v304 = vpop.f32.mrb[0].mxu0
    %v305 = vadd.f32 0.0, %v304
    %v306 = vpop.f32.mrb[0].mxu0
    %307 = vmatprep.mubr.f32.mxu0 0.0
    %308 = vmatmul.mubr.f32.gmra.mrb[0].mxu0 %v112
    %v309 = vpop.f32.mrb[0].mxu0
    %v310 = vadd.f32 0.0, %v309
    %v311 = vpop.f32.mrb[0].mxu0
    %312 = vmatprep.mubr.f32.mxu0 0.0
    %313 = vmatmul.mubr.f32.gmra.mrb[0].mxu0 %v115
    %v314 = vpop.f32.mrb[0].mxu0
    %v315 = vadd.f32 0.0, %v314
    %v316 = vpop.f32.mrb[0].mxu0
    %317 = vmatprep.mubr.f32.mxu0 0.0
    %318 = vmatmul.mubr.f32.gmra.mrb[0].mxu0 %v118
    %v319 = vpop.f32.mrb[0].mxu0
    %v320 = vadd.f32 0.0, %v319
    %v321 = vpop.f32.mrb[0].mxu0
    %322 = vmatprep.mubr.f32.mxu0 0.0
    %323 = vmatmul.mubr.f32.gmra.mrb[0].mxu0 %v121
    %v324 = vpop.f32.mrb[0].mxu0
    %v325 = vadd.f32 0.0, %v324
    %v326 = vpop.f32.mrb[0].mxu0
    %327 = vmatprep.mubr.f32.mxu0 0.0
    %328 = vmatmul.mubr.f32.gmra.mrb[0].mxu0 %v124
    %v329 = vpop.f32.mrb[0].mxu0
    %v330 = vadd.f32 0.0, %v329
    %v331 = vpop.f32.mrb[0].mxu0
    %332 = vmatprep.mubr.f32.mxu0 0.0
    %333 = vmatmul.mubr.f32.gmra.mrb[0].mxu0 %v127
    %v334 = vpop.f32.mrb[0].mxu0
    %v335 = vadd.f32 0.0, %v334
    %v336 = vpop.f32.mrb[0].mxu0
    %337 = vmatprep.mubr.f32.mxu0 0.0
    %338 = vmatmul.mubr.f32.gmra.mrb[0].mxu0 %v130
    %v339 = vpop.f32.mrb[0].mxu0
    %v340 = vadd.f32 0.0, %v339
    %v341 = vpop.f32.mrb[0].mxu0
    %342 = vmatprep.mubr.f32.mxu0 0.0
    %343 = vmatmul.mubr.f32.gmra.mrb[0].mxu0 %v133
    %v344 = vpop.f32.mrb[0].mxu0
    %v345 = vadd.f32 0.0, %v344
    %v346 = vpop.f32.mrb[0].mxu0
    %347 = vmatprep.mubr.f32.mxu0 0.0
    %348 = vmatmul.mubr.f32.gmra.mrb[0].mxu0 %v136
    %v349 = vpop.f32.mrb[0].mxu0
    %v350 = vadd.f32 0.0, %v349
    %v351 = vpop.f32.mrb[0].mxu0
    %352 = vmatprep.mubr.f32.mxu0 0.0
    %353 = vmatmul.mubr.f32.gmra.mrb[0].mxu0 %v139
    %v354 = vpop.f32.mrb[0].mxu0
    %v355 = vadd.f32 0.0, %v354
    %v356 = vpop.f32.mrb[0].mxu0
    %357 = vmatprep.mubr.f32.mxu0 0.0
    %358 = vmatmul.mubr.f32.gmra.mrb[0].mxu0 %v142
    %v359 = vpop.f32.mrb[0].mxu0
    %v360 = vadd.f32 0.0, %v359
    %v361 = vpop.f32.mrb[0].mxu0
    %362 = vmatprep.mubr.f32.mxu0 0.0
    %363 = vmatmul.mubr.f32.gmra.mrb[0].mxu0 %v145
    %v364 = vpop.f32.mrb[0].mxu0
    %v365 = vadd.f32 0.0, %v364
    %v366 = vpop.f32.mrb[0].mxu0
    %367 = vmatprep.mubr.f32.mxu0 0.0
    %368 = vmatmul.mubr.f32.gmra.mrb[0].mxu0 %v148
    %v369 = vpop.f32.mrb[0].mxu0
    %v370 = vadd.f32 0.0, %v369
    %v371 = vpop.f32.mrb[0].mxu0
    %372 = vmatprep.mubr.f32.mxu0 0.0
    %373 = vmatmul.mubr.f32.gmra.mrb[0].mxu0 %v151
    %v374 = vpop.f32.mrb[0].mxu0
    %v375 = vadd.f32 0.0, %v374
    %v376 = vpop.f32.mrb[0].mxu0
    %377 = vdwg.mxu0
    %s378 = smul.u32 0, 256
    %v379 = vlaneseq
    %v380 = vshrl.u32 %v379, 7
    %v381 = vadd.s32 %v380, 8
    %v382 = vadd.s32 %v380, 16
    %v383 = vadd.s32 %v380, 24
    %v384 = vadd.s32 %v380, 32
    %v385 = vadd.s32 %v380, 40
    %v386 = vadd.s32 %v380, 48
    %v387 = vadd.s32 %v380, 56
    %v388 = vadd.s32 %v380, 64
    %v389 = vadd.s32 %v380, 72
    %v390 = vadd.s32 %v380, 80
    %v391 = vadd.s32 %v380, 88
    %v392 = vadd.s32 %v380, 96
    %v393 = vadd.s32 %v380, 104
    %v394 = vadd.s32 %v380, 112
    %v395 = vadd.s32 %v380, 120
    %v396 = vadd.s32 %v380, 128
    %v397 = vadd.s32 %v380, 136
    %v398 = vadd.s32 %v380, 144
    %v399 = vadd.s32 %v380, 152
    %v400 = vadd.s32 %v380, 160
    %v401 = vadd.s32 %v380, 168
    %v402 = vadd.s32 %v380, 176
    %v403 = vadd.s32 %v380, 184
    %v404 = vadd.s32 %v380, 192
    %v405 = vadd.s32 %v380, 200
    %v406 = vadd.s32 %v380, 208
    %v407 = vadd.s32 %v380, 216
    %v408 = vadd.s32 %v380, 224
    %v409 = vadd.s32 %v380, 232
    %v410 = vadd.s32 %v380, 240
    %v411 = vadd.s32 %v380, 248
    %v412 = vstv %s378
    %v413 = vadd.s32 %v412, %v380
    %v414 = vadd.s32 %v412, %v381
    %v415 = vadd.s32 %v412, %v382
    %v416 = vadd.s32 %v412, %v383
    %v417 = vadd.s32 %v412, %v384
    %v418 = vadd.s32 %v412, %v385
    %v419 = vadd.s32 %v412, %v386
    %v420 = vadd.s32 %v412, %v387
    %v421 = vadd.s32 %v412, %v388
    %v422 = vadd.s32 %v412, %v389
    %v423 = vadd.s32 %v412, %v390
    %v424 = vadd.s32 %v412, %v391
    %v425 = vadd.s32 %v412, %v392
    %v426 = vadd.s32 %v412, %v393
    %v427 = vadd.s32 %v412, %v394
    %v428 = vadd.s32 %v412, %v395
    %v429 = vadd.s32 %v412, %v396
    %v430 = vadd.s32 %v412, %v397
    %v431 = vadd.s32 %v412, %v398
    %v432 = vadd.s32 %v412, %v399
    %v433 = vadd.s32 %v412, %v400
    %v434 = vadd.s32 %v412, %v401
    %v435 = vadd.s32 %v412, %v402
    %v436 = vadd.s32 %v412, %v403
    %v437 = vadd.s32 %v412, %v404
    %v438 = vadd.s32 %v412, %v405
    %v439 = vadd.s32 %v412, %v406
    %v440 = vadd.s32 %v412, %v407
    %v441 = vadd.s32 %v412, %v408
    %v442 = vadd.s32 %v412, %v409
    %v443 = vadd.s32 %v412, %v410
    %v444 = vadd.s32 %v412, %v411
    %vm445 = vcmp.lt.s32.totalorder %v413, 200
    %vm446 = vcmp.lt.s32.totalorder %v414, 200
    %vm447 = vcmp.lt.s32.totalorder %v415, 200
    %vm448 = vcmp.lt.s32.totalorder %v416, 200
    %vm449 = vcmp.lt.s32.totalorder %v417, 200
    %vm450 = vcmp.lt.s32.totalorder %v418, 200
    %vm451 = vcmp.lt.s32.totalorder %v419, 200
    %vm452 = vcmp.lt.s32.totalorder %v420, 200
    %vm453 = vcmp.lt.s32.totalorder %v421, 200
    %vm454 = vcmp.lt.s32.totalorder %v422, 200
    %vm455 = vcmp.lt.s32.totalorder %v423, 200
    %vm456 = vcmp.lt.s32.totalorder %v424, 200
    %vm457 = vcmp.lt.s32.totalorder %v425, 200
    %vm458 = vcmp.lt.s32.totalorder %v426, 200
    %vm459 = vcmp.lt.s32.totalorder %v427, 200
    %vm460 = vcmp.lt.s32.totalorder %v428, 200
    %vm461 = vcmp.lt.s32.totalorder %v429, 200
    %vm462 = vcmp.lt.s32.totalorder %v430, 200
    %vm463 = vcmp.lt.s32.totalorder %v431, 200
    %vm464 = vcmp.lt.s32.totalorder %v432, 200
    %vm465 = vcmp.lt.s32.totalorder %v433, 200
    %vm466 = vcmp.lt.s32.totalorder %v434, 200
    %vm467 = vcmp.lt.s32.totalorder %v435, 200
    %vm468 = vcmp.lt.s32.totalorder %v436, 200
    %vm469 = vcmp.lt.s32.totalorder %v437, 200
    %vm470 = vcmp.lt.s32.totalorder %v438, 200
    %vm471 = vcmp.lt.s32.totalorder %v439, 200
    %vm472 = vcmp.lt.s32.totalorder %v440, 200
    %vm473 = vcmp.lt.s32.totalorder %v441, 200
    %vm474 = vcmp.lt.s32.totalorder %v442, 200
    %vm475 = vcmp.lt.s32.totalorder %v443, 200
    %vm476 = vcmp.lt.s32.totalorder %v444, 200
    %v477 = vsel %vm445, %v220, 0.0
    %v478 = vsel %vm446, %v225, 0.0
    %v479 = vsel %vm447, %v230, 0.0
    %v480 = vsel %vm448, %v235, 0.0
    %v481 = vsel %vm449, %v240, 0.0
    %v482 = vsel %vm450, %v245, 0.0
    %v483 = vsel %vm451, %v250, 0.0
    %v484 = vsel %vm452, %v255, 0.0
    %v485 = vsel %vm453, %v260, 0.0
    %v486 = vsel %vm454, %v265, 0.0
    %v487 = vsel %vm455, %v270, 0.0
    %v488 = vsel %vm456, %v275, 0.0
    %v489 = vsel %vm457, %v280, 0.0
    %v490 = vsel %vm458, %v285, 0.0
    %v491 = vsel %vm459, %v290, 0.0
    %v492 = vsel %vm460, %v295, 0.0
    %v493 = vsel %vm461, %v300, 0.0
    %v494 = vsel %vm462, %v305, 0.0
    %v495 = vsel %vm463, %v310, 0.0
    %v496 = vsel %vm464, %v315, 0.0
    %v497 = vsel %vm465, %v320, 0.0
    %v498 = vsel %vm466, %v325, 0.0
    %v499 = vsel %vm467, %v330, 0.0
    %v500 = vsel %vm468, %v335, 0.0
    %v501 = vsel %vm469, %v340, 0.0
    %v502 = vsel %vm470, %v345, 0.0
    %v503 = vsel %vm471, %v350, 0.0
    %v504 = vsel %vm472, %v355, 0.0
    %v505 = vsel %vm473, %v360, 0.0
    %v506 = vsel %vm474, %v365, 0.0
    %v507 = vsel %vm475, %v370, 0.0
    %v508 = vsel %vm476, %v375, 0.0
    %v509 = vpack.c.bf16 %v478, %v477
    %v510 = vpack.c.bf16 %v480, %v479
    %v511 = vpack.c.bf16 %v482, %v481
    %v512 = vpack.c.bf16 %v484, %v483
    %v513 = vpack.c.bf16 %v486, %v485
    %v514 = vpack.c.bf16 %v488, %v487
    %v515 = vpack.c.bf16 %v490, %v489
    %v516 = vpack.c.bf16 %v492, %v491
    %v517 = vpack.c.bf16 %v494, %v493
    %v518 = vpack.c.bf16 %v496, %v495
    %v519 = vpack.c.bf16 %v498, %v497
    %v520 = vpack.c.bf16 %v500, %v499
    %v521 = vpack.c.bf16 %v502, %v501
    %v522 = vpack.c.bf16 %v504, %v503
    %v523 = vpack.c.bf16 %v506, %v505
    %v524 = vpack.c.bf16 %v508, %v507
    %v541 = vunpack.c.l.b16 %v509
    %v542 = vunpack.c.h.b16 %v509
    %v543 = vunpack.c.l.b16 %v510
    %v544 = vunpack.c.h.b16 %v510
    %v545 = vunpack.c.l.b16 %v511
    %v546 = vunpack.c.h.b16 %v511
    %v547 = vunpack.c.l.b16 %v512
    %v548 = vunpack.c.h.b16 %v512
    %v549 = vunpack.c.l.b16 %v513
    %v550 = vunpack.c.h.b16 %v513
    %v551 = vunpack.c.l.b16 %v514
    %v552 = vunpack.c.h.b16 %v514
    %v553 = vunpack.c.l.b16 %v515
    %v554 = vunpack.c.h.b16 %v515
    %v555 = vunpack.c.l.b16 %v516
    %v556 = vunpack.c.h.b16 %v516
    %v557 = vunpack.c.l.b16 %v517
    %v558 = vunpack.c.h.b16 %v517
    %v559 = vunpack.c.l.b16 %v518
    %v560 = vunpack.c.h.b16 %v518
    %v561 = vunpack.c.l.b16 %v519
    %v562 = vunpack.c.h.b16 %v519
    %v563 = vunpack.c.l.b16 %v520
    %v564 = vunpack.c.h.b16 %v520
    %v565 = vunpack.c.l.b16 %v521
    %v566 = vunpack.c.h.b16 %v521
    %v567 = vunpack.c.l.b16 %v522
    %v568 = vunpack.c.h.b16 %v522
    %v569 = vunpack.c.l.b16 %v523
    %v570 = vunpack.c.h.b16 %v523
    %v571 = vunpack.c.l.b16 %v524
    %v572 = vunpack.c.h.b16 %v524
    %v573 = vpack.c.b16 %v541, %v541
    %v574 = vpack.c.b16 %v542, %v542
    %v575 = vpack.c.b16 %v543, %v543
    %v576 = vpack.c.b16 %v544, %v544
    %v577 = vpack.c.b16 %v545, %v545
    %v578 = vpack.c.b16 %v546, %v546
    %v579 = vpack.c.b16 %v547, %v547
    %v580 = vpack.c.b16 %v548, %v548
    %v581 = vpack.c.b16 %v549, %v549
    %v582 = vpack.c.b16 %v550, %v550
    %v583 = vpack.c.b16 %v551, %v551
    %v584 = vpack.c.b16 %v552, %v552
    %v585 = vpack.c.b16 %v553, %v553
    %v586 = vpack.c.b16 %v554, %v554
    %v587 = vpack.c.b16 %v555, %v555
    %v588 = vpack.c.b16 %v556, %v556
    %v589 = vpack.c.b16 %v557, %v557
    %v590 = vpack.c.b16 %v558, %v558
    %v591 = vpack.c.b16 %v559, %v559
    %v592 = vpack.c.b16 %v560, %v560
    %v593 = vpack.c.b16 %v561, %v561
    %v594 = vpack.c.b16 %v562, %v562
    %v595 = vpack.c.b16 %v563, %v563
    %v596 = vpack.c.b16 %v564, %v564
    %v597 = vpack.c.b16 %v565, %v565
    %v598 = vpack.c.b16 %v566, %v566
    %v599 = vpack.c.b16 %v567, %v567
    %v600 = vpack.c.b16 %v568, %v568
    %v601 = vpack.c.b16 %v569, %v569
    %v602 = vpack.c.b16 %v570, %v570
    %v603 = vpack.c.b16 %v571, %v571
    %v604 = vpack.c.b16 %v572, %v572
    %637 = vst [vmem:[#allocation2] sm:$0xf] %v573
    %638 = vst [vmem:[#allocation2 + $0x4] sm:$0xf] %v574
    %639 = vst [vmem:[#allocation2 + $0x8] sm:$0xf] %v575
    %640 = vst [vmem:[#allocation2 + $0xc] sm:$0xf] %v576
    %641 = vst [vmem:[#allocation2 + $0x10] sm:$0xf] %v577
    %642 = vst [vmem:[#allocation2 + $0x14] sm:$0xf] %v578
    %643 = vst [vmem:[#allocation2 + $0x18] sm:$0xf] %v579
    %644 = vst [vmem:[#allocation2 + $0x1c] sm:$0xf] %v580
    %645 = vst [vmem:[#allocation2 + $0x20] sm:$0xf] %v581
    %646 = vst [vmem:[#allocation2 + $0x24] sm:$0xf] %v582
    %647 = vst [vmem:[#allocation2 + $0x28] sm:$0xf] %v583
    %648 = vst [vmem:[#allocation2 + $0x2c] sm:$0xf] %v584
    %649 = vst [vmem:[#allocation2 + $0x30] sm:$0xf] %v585
    %650 = vst [vmem:[#allocation2 + $0x34] sm:$0xf] %v586
    %651 = vst [vmem:[#allocation2 + $0x38] sm:$0xf] %v587
    %652 = vst [vmem:[#allocation2 + $0x3c] sm:$0xf] %v588
    %653 = vst [vmem:[#allocation2 + $0x40] sm:$0xf] %v589
    %654 = vst [vmem:[#allocation2 + $0x44] sm:$0xf] %v590
    %655 = vst [vmem:[#allocation2 + $0x48] sm:$0xf] %v591
    %656 = vst [vmem:[#allocation2 + $0x4c] sm:$0xf] %v592
    %657 = vst [vmem:[#allocation2 + $0x50] sm:$0xf] %v593
    %658 = vst [vmem:[#allocation2 + $0x54] sm:$0xf] %v594
    %659 = vst [vmem:[#allocation2 + $0x58] sm:$0xf] %v595
    %660 = vst [vmem:[#allocation2 + $0x5c] sm:$0xf] %v596
    %661 = vst [vmem:[#allocation2 + $0x60] sm:$0xf] %v597
    %662 = vst [vmem:[#allocation2 + $0x64] sm:$0xf] %v598
    %663 = vst [vmem:[#allocation2 + $0x68] sm:$0xf] %v599
    %664 = vst [vmem:[#allocation2 + $0x6c] sm:$0xf] %v600
    %665 = vst [vmem:[#allocation2 + $0x70] sm:$0xf] %v601
    %666 = vst [vmem:[#allocation2 + $0x74] sm:$0xf] %v602
    %667 = vst [vmem:[#allocation2 + $0x78] sm:$0xf] %v603
    %668 = vst [vmem:[#allocation2 + $0x7c] sm:$0xf] %v604
    // Predicated region
    $region10: #{tpu_custom_call.1} parent=1 // pred_check
      _
    $region11: #{tpu_custom_call.1} parent=1 // pred_check_branch
      %670 = sbr.rel (0) target = $region13
    $region12: #{tpu_custom_call.1} parent=1 // pred_region
      %s672 = ssub.s32 2048, 2048
      %673 = vsyncadd [#allocation3], %s672
      %s674 = sshll.u32 [#allocation2], 4
      %s675 = int_to_ptr.vmem [resolvable:$true] %s674
      %680 = dma.vmem_to_hbm [thread:$0]  %s675, 2048, %s2, [#allocation3], 64, 64, 4
    $region13: #{tpu_custom_call.1} parent=1 // pred_fallthru
      _
    // Predicated region
    $region14: #{tpu_custom_call.1} parent=1 // pred_check
      _
    $region15: #{tpu_custom_call.1} parent=1 // pred_check_branch
      %682 = sbr.rel (0) target = $region17
    $region16: #{tpu_custom_call.1} parent=1 // pred_region
      %683 = dma.done [#allocation3], 2048
    $region17: #{tpu_custom_call.1} parent=1 // pred_fallthru
      _
    %684 = vsyncpa [#allocation3], 1

</llo_original>
